<compile_context>
chip_gen: v7x
topology: tpu7x:2x2x1
jax: 0.10.0
libtpu: 0.0.40
codegen_flags: <defaults>
</compile_context>

<pallas_src>
import jax
import jax.numpy as jnp
from jax import lax
from jax.experimental import pallas as pl
from jax.experimental.pallas import tpu as pltpu

_NEG_BIG = -1e30  # finite "minus infinity" filler: exp() -> 0, never NaN


def _round_up(x, m):
    return ((x + m - 1) // m) * m


def _vmem_capacity_bytes():
    """Per-core VMEM capacity; conservative fallback = v7x (64 MiB)."""
    try:
        info = pltpu.get_tpu_info()
        cap = getattr(info, "vmem_capacity_bytes", None)
        if cap:
            return int(cap)
    except Exception:
        pass
    return 64 * 1024 * 1024


def _num_tensorcores():
    """Best-effort TensorCore-per-chip count (v7x: 2). Fallback: 1 (safe)."""
    try:
        info = pltpu.get_tpu_info()
        for name in ("num_cores", "core_count", "num_tensorcores",
                     "tensor_core_count", "cores_per_chip"):
            v = getattr(info, name, None)
            if v:
                return max(1, min(int(v), 2))
    except Exception:
        pass
    return 1


def _row_align(*dtypes):
    """Sublane alignment for the batch tile: 8 (f32) / 16 (bf16) / 32 (int8)."""
    a = 8
    for dt in dtypes:
        a = max(a, 8 * max(1, 4 // jnp.dtype(dt).itemsize))
    return a


def _choose_tiles(B, C, scores_dtype, target_dtype, vmem_budget,
                  target_step_bytes=4 << 20):
    """Pick (TB, TC): batch tile sized by HBM bytes/step, class tile bounds VMEM."""
    in_bytes = jnp.dtype(scores_dtype).itemsize + jnp.dtype(target_dtype).itemsize
    align = _row_align(scores_dtype, target_dtype)
    # double-buffered raw inputs + ~8 live (TB, TC) f32 intermediates
    per_elem = 2 * in_bytes + 32

    # --- class (lane) tile: prefer full rows; C-tile (multiple of 128) only
    #     when full rows would force tiny batch tiles (keeps VMEM bounded
    #     independently of C — critical on v7x's 64 MiB VMEM). ---
    min_tb = max(align, 64)
    if C * per_elem * min_tb <= vmem_budget:
        TC = C
    else:
        TC = (vmem_budget // (max(min_tb, 256) * per_elem)) // 128 * 128
        TC = max(128, min(TC, _round_up(C, 128)))

    # --- batch (sublane) tile: target ~target_step_bytes of raw input per
    #     grid step (hides the ~0.35us/step overhead), clamped by VMEM. ---
    tb_budget = max(align, (vmem_budget // (TC * per_elem)) // align * align)
    tb_target = max(align, _round_up(target_step_bytes // max(1, TC * in_bytes), align))
    TB = min(tb_budget, tb_target)
    if TB >= B:
        TB = B  # a single full-height block is always a legal block shape
    return TB, TC


def _make_kernel(B, C, TB, TC, nbp, nct, needs_row_mask, needs_col_mask,
                 approx_recip):

    def kernel(scores_ref, target_ref, out_ref,
               m_sc, se_sc, sem_sc, sems_sc, acc_sc):
        c = pl.program_id(0)   # core slab          ("parallel")
        i = pl.program_id(1)   # batch tile in slab ("arbitrary")
        k = pl.program_id(2)   # class tile         ("arbitrary", reduction)

        @pl.when((i == 0) & (k == 0))
        def _init_slab():
            acc_sc[...] = jnp.zeros_like(acc_sc)

        @pl.when(k == 0)
        def _init_row_stats():
            m_sc[...] = jnp.full_like(m_sc, -jnp.inf)
            se_sc[...] = jnp.zeros_like(se_sc)
            sem_sc[...] = jnp.zeros_like(sem_sc)
            sems_sc[...] = jnp.zeros_like(sems_sc)

        s = scores_ref[...].astype(jnp.float32)   # (TB, TC); bf16 input OK
        m = target_ref[...].astype(jnp.float32)   # (TB, TC); int8/bool input OK

        if needs_col_mask:
            # Ragged last class tile: invalid lanes contribute exp() == 0.
            col_ids = k * TC + lax.broadcasted_iota(jnp.int32, (1, TC), 1)
            col_valid = col_ids < C
            s = jnp.where(col_valid, s, _NEG_BIG)
            m = jnp.where(col_valid, m, 0.0)

        if needs_row_mask:
            # Ragged / phantom (clamped) batch tiles: make rows numerically
            # neutral here, zero their CE contribution below.
            row_ids = (c * nbp + i) * TB + lax.broadcasted_iota(
                jnp.int32, (TB, 1), 0)
            row_valid = row_ids < B
            s = jnp.where(row_valid, s, 0.0)
            m = jnp.where(row_valid, m, 1.0)

        # Online (flash-style) masked-softmax statistics over the class axis.
        tile_max = jnp.max(s, axis=1, keepdims=True)              # (TB, 1)
        m_new = jnp.maximum(m_sc[...], tile_max)
        alpha = jnp.exp(m_sc[...] - m_new)                        # 0 on 1st tile
        e = jnp.exp(s - m_new)                                    # (TB, TC) EUP
        em = e * m
        se_sc[...] = alpha * se_sc[...] + jnp.sum(e, axis=1, keepdims=True)
        sem_sc[...] = alpha * sem_sc[...] + jnp.sum(em, axis=1, keepdims=True)
        sems_sc[...] = alpha * sems_sc[...] + jnp.sum(em * s, axis=1, keepdims=True)
        m_sc[...] = m_new
        # NOTE: if an xprof trace shows the XLU row-sums binding after input
        # dtypes are narrowed, the three sums can be folded into one MXU dot
        # against a (TC, small) constant — MXU is idle here. Not needed while
        # clearly HBM-bound.

        @pl.when(k == nct - 1)
        def _finish_rows():
            # CE_row = lse_row - sum(em*s)/sum(em)   (since sum_c p == 1)
            lse = m_sc[...] + jnp.log(se_sc[...])
            inv_denom = pl.reciprocal(sem_sc[...], approx=approx_recip)
            ce_rows = lse - sems_sc[...] * inv_denom
            if needs_row_mask:
                row_ids = (c * nbp + i) * TB + lax.broadcasted_iota(
                    jnp.int32, (TB, 1), 0)
                ce_rows = jnp.where(row_ids < B, ce_rows, 0.0)
            acc_sc[...] += ce_rows

        @pl.when((i == nbp - 1) & (k == nct - 1))
        def _finalize_slab():
            total = jnp.sum(acc_sc[...])
            out_ref[...] = jnp.zeros(out_ref.shape, out_ref.dtype) + total

    return kernel


def soft_ce(scores, target, if_average=False, *, block_rows=None,
            block_cols=None, num_cores=None, approx_reciprocal=True):
    """scores: (B, C); target: (B, C) soft/binary mask -> scalar CE (float32).

    Kernel is HBM-bound: prefer bf16 `scores` and int8/bool `target` (the
    kernel upcasts to f32 internally), which cuts bytes read ~2.6x.
    """
    B, C = scores.shape
    assert target.shape == (B, C)

    capacity = _vmem_capacity_bytes()
    vmem_budget = max(8 << 20, min(capacity // 3, 48 << 20))

    auto_tb, auto_tc = _choose_tiles(B, C, scores.dtype, target.dtype, vmem_budget)
    TB = block_rows if block_rows is not None else auto_tb
    TC = block_cols if block_cols is not None else auto_tc

    align = _row_align(scores.dtype, target.dtype)
    assert TB == B or TB % align == 0, (
        f"block_rows must equal B or be a multiple of {align} for these dtypes")
    assert TC == C or TC % 128 == 0, "block_cols must equal C or be a multiple of 128"

    nb = pl.cdiv(B, TB)      # real batch-tile count
    nct = pl.cdiv(C, TC)     # class-tile count (reduction axis)

    NC = num_cores if num_cores is not None else _num_tensorcores()
    NC = max(1, min(int(NC), nb))   # never more slabs than batch tiles
    nbp = pl.cdiv(nb, NC)           # batch tiles per core slab

    needs_row_mask = (NC * nbp * TB) != B   # ragged last tile and/or phantom tiles
    needs_col_mask = (nct * TC) != C        # ragged last class tile

    kernel = _make_kernel(B, C, TB, TC, nbp, nct,
                          needs_row_mask, needs_col_mask, approx_reciprocal)

    # VMEM accounting: double-buffered raw inputs + in-kernel f32 working set
    # (~8 live (TB,TC) f32 temporaries) + scratches + output blocks + margin.
    in_bytes = jnp.dtype(scores.dtype).itemsize + jnp.dtype(target.dtype).itemsize
    needed = TB * TC * (2 * in_bytes + 32) + 5 * TB * 4 + 4 * (8 * 128 * 4) + (1 << 20)
    cap_limit = max(32 << 20, min(int(0.75 * capacity), 112 << 20))
    vmem_limit = int(min(cap_limit, max(32 << 20, 2 * needed)))

    # Per-core slab of batch tiles; clamp keeps block indices in range for
    # phantom tiles (their rows are >= B, so the kernel zeroes them anyway).
    def in_map(c, i, k):
        return (jnp.minimum(c * nbp + i, nb - 1), k)

    # Per-core partial sums land in separate lane-dense (8,128) output blocks.
    # NOTE: pipeline_mode=pl.Buffered(3) on the input specs is a profiling-
    # gated option if a trace shows exposed DMA at tile boundaries on v7x.
    out = pl.pallas_call(
        kernel,
        out_shape=jax.ShapeDtypeStruct((NC, 8, 128), jnp.float32),
        grid_spec=pltpu.PrefetchScalarGridSpec(
            num_scalar_prefetch=0,
            grid=(NC, nbp, nct),
            in_specs=[
                pl.BlockSpec((TB, TC), in_map),
                pl.BlockSpec((TB, TC), in_map),
            ],
            out_specs=pl.BlockSpec((1, 8, 128), lambda c, i, k: (c, 0, 0)),
            scratch_shapes=[pltpu.VMEM((TB, 1), jnp.float32)] * 5,
        ),
        compiler_params=pltpu.CompilerParams(
            dimension_semantics=("parallel", "arbitrary", "arbitrary"),
            vmem_limit_bytes=vmem_limit,
        ),
    )(scores, target)

    ce = jnp.sum(out[:, 0, 0])
    if if_average:
        ce = ce / B
    return ce


def _soft_ce_ref(scores, target, if_average=False):
    """Pure-JAX f32 reference mirroring the PyTorch module."""
    scores = scores.astype(jnp.float32)
    target = target.astype(jnp.float32)
    row_max = jnp.max(scores, axis=1, keepdims=True)
    e = jnp.exp(scores - row_max)
    e_masked = e * target
    p = e_masked / jnp.sum(e_masked, axis=1, keepdims=True)
    logp = scores - (jnp.log(jnp.sum(e, axis=1, keepdims=True)) + row_max)
    ce = jnp.sum(-p * logp)
    if if_average:
        ce = ce / scores.shape[0]
    return ce


if __name__ == "__main__":
    key = jax.random.PRNGKey(0)
    k1, k2, k3, k4 = jax.random.split(key, 4)

    # --- Test 1: f32 inputs, forced 8-row tiles -> ragged last batch tile,
    #     auto core-count detection. ---
    B1, C1 = 20, 16
    scores1 = jax.random.normal(k1, (B1, C1), dtype=jnp.float32)
    target1 = (jax.random.uniform(k2, (B1, C1)) > 0.5).astype(jnp.float32)
    target1 = target1.at[:, 0].set(1.0)   # non-empty mask per row (precondition)

    ce1 = jax.block_until_ready(soft_ce(scores1, target1, block_rows=8))
    ref1 = _soft_ce_ref(scores1, target1)
    assert jnp.allclose(ce1, ref1, rtol=2e-3, atol=2e-3), (ce1, ref1)

    # --- Test 2: narrow dtypes (bf16 scores, int8 target), forced class
    #     tiling (TC=128 on C=200 -> ragged class tile, online softmax),
    #     forced 2-core slab split (phantom clamped batch tile). ---
    B2, C2 = 72, 200
    scores2 = jax.random.normal(k3, (B2, C2), dtype=jnp.float32).astype(jnp.bfloat16)
    target2 = jax.random.uniform(k4, (B2, C2)) > 0.5
    target2 = target2.at[:, 0].set(True)
    target2_i8 = target2.astype(jnp.int8)

    ce2 = jax.block_until_ready(
        soft_ce(scores2, target2_i8, block_rows=32, block_cols=128, num_cores=2))
    ref2 = _soft_ce_ref(scores2, target2_i8)
    assert jnp.allclose(ce2, ref2, rtol=2e-3, atol=2e-3), (ce2, ref2)

    # --- Test 3: fully automatic tile / core selection + if_average path. ---
    ce3 = jax.block_until_ready(soft_ce(scores1, target1, if_average=True))
    ref3 = _soft_ce_ref(scores1, target1, if_average=True)
    assert jnp.allclose(ce3, ref3, rtol=2e-3, atol=2e-3), (ce3, ref3)

    print("KERNEL_OK")
</pallas_src>

<mosaic_0001>
module attributes {stable_mosaic.version = 11 : i64} {
  func.func @kernel(%arg0: i32, %arg1: i32, %arg2: i32, %arg3: memref<8x16xf32, #tpu.memory_space<vmem>>, %arg4: memref<8x16xf32, #tpu.memory_space<vmem>>, %arg5: memref<1x8x128xf32, #tpu.memory_space<vmem>>, %arg6: memref<8x1xf32, #tpu.memory_space<vmem>>, %arg7: memref<8x1xf32, #tpu.memory_space<vmem>>, %arg8: memref<8x1xf32, #tpu.memory_space<vmem>>, %arg9: memref<8x1xf32, #tpu.memory_space<vmem>>, %arg10: memref<8x1xf32, #tpu.memory_space<vmem>>) attributes {dimension_semantics = [#tpu.dimension_semantics<parallel>, #tpu.dimension_semantics<arbitrary>, #tpu.dimension_semantics<arbitrary>], iteration_bounds = array<i64: 1, 3, 1>, scalar_prefetch = 0 : i64, scratch_operands = 5 : i64, tpu.core_type = #tpu.core_type<tc>, window_params = [{transform_indices = @transform_0, window_bounds = array<i64: 8, 16>}, {transform_indices = @transform_1, window_bounds = array<i64: 8, 16>}, {transform_indices = @transform_2, window_bounds = array<i64: 1, 8, 128>}]} {
    %c0_i32 = arith.constant 0 : i32
    %0 = arith.cmpi eq, %arg1, %c0_i32 : i32
    %c0_i32_0 = arith.constant 0 : i32
    %1 = arith.cmpi eq, %arg2, %c0_i32_0 : i32
    %2 = arith.andi %0, %1 : i1
    %3 = arith.extui %2 : i1 to i32
    %c0_i32_1 = arith.constant 0 : i32
    %4 = arith.cmpi ne, %3, %c0_i32_1 : i32
    scf.if %4 {
      %cst_34 = arith.constant 0.000000e+00 : f32
      %65 = vector.broadcast %cst_34 : f32 to vector<8x1xf32>
      %c0_35 = arith.constant 0 : index
      %c0_36 = arith.constant 0 : index
      %66 = vector.load %arg10[%c0_35, %c0_36] : memref<8x1xf32, #tpu.memory_space<vmem>>, vector<8x1xf32>
      tpu.vector_store %arg10[%c0_35, %c0_36], %65 {strides = array<i32>} : memref<8x1xf32, #tpu.memory_space<vmem>>, vector<8x1xf32>,
    } else {
    }
    %c0_i32_2 = arith.constant 0 : i32
    %5 = arith.cmpi eq, %arg2, %c0_i32_2 : i32
    %6 = arith.extui %5 : i1 to i32
    %c0_i32_3 = arith.constant 0 : i32
    %7 = arith.cmpi ne, %6, %c0_i32_3 : i32
    scf.if %7 {
      %cst_34 = arith.constant 0xFF800000 : f32
      %65 = vector.broadcast %cst_34 : f32 to vector<8x1xf32>
      %c0_35 = arith.constant 0 : index
      %c0_36 = arith.constant 0 : index
      %66 = vector.load %arg6[%c0_35, %c0_36] : memref<8x1xf32, #tpu.memory_space<vmem>>, vector<8x1xf32>
      tpu.vector_store %arg6[%c0_35, %c0_36], %65 {strides = array<i32>} : memref<8x1xf32, #tpu.memory_space<vmem>>, vector<8x1xf32>,
      %cst_37 = arith.constant 0.000000e+00 : f32
      %67 = vector.broadcast %cst_37 : f32 to vector<8x1xf32>
      %c0_38 = arith.constant 0 : index
      %c0_39 = arith.constant 0 : index
      %68 = vector.load %arg7[%c0_38, %c0_39] : memref<8x1xf32, #tpu.memory_space<vmem>>, vector<8x1xf32>
      tpu.vector_store %arg7[%c0_38, %c0_39], %67 {strides = array<i32>} : memref<8x1xf32, #tpu.memory_space<vmem>>, vector<8x1xf32>,
      %cst_40 = arith.constant 0.000000e+00 : f32
      %69 = vector.broadcast %cst_40 : f32 to vector<8x1xf32>
      %c0_41 = arith.constant 0 : index
      %c0_42 = arith.constant 0 : index
      %70 = vector.load %arg8[%c0_41, %c0_42] : memref<8x1xf32, #tpu.memory_space<vmem>>, vector<8x1xf32>
      tpu.vector_store %arg8[%c0_41, %c0_42], %69 {strides = array<i32>} : memref<8x1xf32, #tpu.memory_space<vmem>>, vector<8x1xf32>,
      %cst_43 = arith.constant 0.000000e+00 : f32
      %71 = vector.broadcast %cst_43 : f32 to vector<8x1xf32>
      %c0_44 = arith.constant 0 : index
      %c0_45 = arith.constant 0 : index
      %72 = vector.load %arg9[%c0_44, %c0_45] : memref<8x1xf32, #tpu.memory_space<vmem>>, vector<8x1xf32>
      tpu.vector_store %arg9[%c0_44, %c0_45], %71 {strides = array<i32>} : memref<8x1xf32, #tpu.memory_space<vmem>>, vector<8x1xf32>,
    } else {
    }
    %c0 = arith.constant 0 : index
    %c0_4 = arith.constant 0 : index
    %8 = vector.load %arg3[%c0, %c0_4] : memref<8x16xf32, #tpu.memory_space<vmem>>, vector<8x16xf32>
    %c0_5 = arith.constant 0 : index
    %c0_6 = arith.constant 0 : index
    %9 = vector.load %arg4[%c0_5, %c0_6] : memref<8x16xf32, #tpu.memory_space<vmem>>, vector<8x16xf32>
    %c3_i32 = arith.constant 3 : i32
    %10 = arith.muli %arg0, %c3_i32 : i32
    %11 = arith.addi %10, %arg1 : i32
    %c8_i32 = arith.constant 8 : i32
    %12 = arith.muli %11, %c8_i32 : i32
    %13 = tpu.iota {dimensions = array<i32: 0>} : vector<8x1xi32>
    %14 = vector.broadcast %12 : i32 to vector<8x1xi32>
    %15 = arith.addi %14, %13 : vector<8x1xi32>
    %c20_i32 = arith.constant 20 : i32
    %16 = vector.broadcast %c20_i32 : i32 to vector<8x1xi32>
    %17 = arith.cmpi slt, %15, %16 : vector<8x1xi32>
    %cst = arith.constant 0.000000e+00 : f32
    %18 = vector.shape_cast %17 : vector<8x1xi1> to vector<8x1xi1>
    %19 = vector.broadcast %18 : vector<8x1xi1> to vector<8x16xi1>
    %20 = vector.broadcast %cst : f32 to vector<8x16xf32>
    %21 = arith.select %19, %8, %20 : vector<8x16xi1>, vector<8x16xf32>
    %cst_7 = arith.constant 1.000000e+00 : f32
    %22 = vector.shape_cast %17 : vector<8x1xi1> to vector<8x1xi1>
    %23 = vector.broadcast %22 : vector<8x1xi1> to vector<8x16xi1>
    %24 = vector.broadcast %cst_7 : f32 to vector<8x16xf32>
    %25 = arith.select %23, %9, %24 : vector<8x16xi1>, vector<8x16xf32>
    %cst_8 = arith.constant dense<0xFF800000> : vector<8xf32>
    %26 = vector.multi_reduction <maximumf>, %21, %cst_8 [1] : vector<8x16xf32> to vector<8xf32>
    %27 = vector.shape_cast %26 : vector<8xf32> to vector<8x1xf32>
    %c0_9 = arith.constant 0 : index
    %c0_10 = arith.constant 0 : index
    %28 = vector.load %arg6[%c0_9, %c0_10] : memref<8x1xf32, #tpu.memory_space<vmem>>, vector<8x1xf32>
    %29 = arith.maximumf %28, %27 : vector<8x1xf32>
    %c0_11 = arith.constant 0 : index
    %c0_12 = arith.constant 0 : index
    %30 = vector.load %arg6[%c0_11, %c0_12] : memref<8x1xf32, #tpu.memory_space<vmem>>, vector<8x1xf32>
    %31 = arith.subf %30, %29 : vector<8x1xf32>
    %32 = math.exp %31 : vector<8x1xf32>
    %33 = vector.broadcast %29 : vector<8x1xf32> to vector<8x16xf32>
    %34 = arith.subf %21, %33 : vector<8x16xf32>
    %35 = math.exp %34 : vector<8x16xf32>
    %36 = arith.mulf %35, %25 : vector<8x16xf32>
    %c0_13 = arith.constant 0 : index
    %c0_14 = arith.constant 0 : index
    %37 = vector.load %arg7[%c0_13, %c0_14] : memref<8x1xf32, #tpu.memory_space<vmem>>, vector<8x1xf32>
    %38 = arith.mulf %32, %37 : vector<8x1xf32>
    %cst_15 = arith.constant dense<0.000000e+00> : vector<8xf32>
    %39 = vector.multi_reduction <add>, %35, %cst_15 [1] : vector<8x16xf32> to vector<8xf32>
    %40 = vector.shape_cast %39 : vector<8xf32> to vector<8x1xf32>
    %41 = arith.addf %38, %40 : vector<8x1xf32>
    %c0_16 = arith.constant 0 : index
    %c0_17 = arith.constant 0 : index
    %42 = vector.load %arg7[%c0_16, %c0_17] : memref<8x1xf32, #tpu.memory_space<vmem>>, vector<8x1xf32>
    tpu.vector_store %arg7[%c0_16, %c0_17], %41 {strides = array<i32>} : memref<8x1xf32, #tpu.memory_space<vmem>>, vector<8x1xf32>,
    %c0_18 = arith.constant 0 : index
    %c0_19 = arith.constant 0 : index
    %43 = vector.load %arg8[%c0_18, %c0_19] : memref<8x1xf32, #tpu.memory_space<vmem>>, vector<8x1xf32>
    %44 = arith.mulf %32, %43 : vector<8x1xf32>
    %cst_20 = arith.constant dense<0.000000e+00> : vector<8xf32>
    %45 = vector.multi_reduction <add>, %36, %cst_20 [1] : vector<8x16xf32> to vector<8xf32>
    %46 = vector.shape_cast %45 : vector<8xf32> to vector<8x1xf32>
    %47 = arith.addf %44, %46 : vector<8x1xf32>
    %c0_21 = arith.constant 0 : index
    %c0_22 = arith.constant 0 : index
    %48 = vector.load %arg8[%c0_21, %c0_22] : memref<8x1xf32, #tpu.memory_space<vmem>>, vector<8x1xf32>
    tpu.vector_store %arg8[%c0_21, %c0_22], %47 {strides = array<i32>} : memref<8x1xf32, #tpu.memory_space<vmem>>, vector<8x1xf32>,
    %c0_23 = arith.constant 0 : index
    %c0_24 = arith.constant 0 : index
    %49 = vector.load %arg9[%c0_23, %c0_24] : memref<8x1xf32, #tpu.memory_space<vmem>>, vector<8x1xf32>
    %50 = arith.mulf %32, %49 : vector<8x1xf32>
    %51 = arith.mulf %36, %21 : vector<8x16xf32>
    %cst_25 = arith.constant dense<0.000000e+00> : vector<8xf32>
    %52 = vector.multi_reduction <add>, %51, %cst_25 [1] : vector<8x16xf32> to vector<8xf32>
    %53 = vector.shape_cast %52 : vector<8xf32> to vector<8x1xf32>
    %54 = arith.addf %50, %53 : vector<8x1xf32>
    %c0_26 = arith.constant 0 : index
    %c0_27 = arith.constant 0 : index
    %55 = vector.load %arg9[%c0_26, %c0_27] : memref<8x1xf32, #tpu.memory_space<vmem>>, vector<8x1xf32>
    tpu.vector_store %arg9[%c0_26, %c0_27], %54 {strides = array<i32>} : memref<8x1xf32, #tpu.memory_space<vmem>>, vector<8x1xf32>,
    %c0_28 = arith.constant 0 : index
    %c0_29 = arith.constant 0 : index
    %56 = vector.load %arg6[%c0_28, %c0_29] : memref<8x1xf32, #tpu.memory_space<vmem>>, vector<8x1xf32>
    tpu.vector_store %arg6[%c0_28, %c0_29], %29 {strides = array<i32>} : memref<8x1xf32, #tpu.memory_space<vmem>>, vector<8x1xf32>,
    %c0_i32_30 = arith.constant 0 : i32
    %57 = arith.cmpi eq, %arg2, %c0_i32_30 : i32
    %58 = arith.extui %57 : i1 to i32
    %c0_i32_31 = arith.constant 0 : i32
    %59 = arith.cmpi ne, %58, %c0_i32_31 : i32
    scf.if %59 {
      %c0_34 = arith.constant 0 : index
      %c0_35 = arith.constant 0 : index
      %65 = vector.load %arg6[%c0_34, %c0_35] : memref<8x1xf32, #tpu.memory_space<vmem>>, vector<8x1xf32>
      %c0_36 = arith.constant 0 : index
      %c0_37 = arith.constant 0 : index
      %66 = vector.load %arg7[%c0_36, %c0_37] : memref<8x1xf32, #tpu.memory_space<vmem>>, vector<8x1xf32>
      %67 = math.log %66 : vector<8x1xf32>
      %68 = arith.addf %65, %67 : vector<8x1xf32>
      %c0_38 = arith.constant 0 : index
      %c0_39 = arith.constant 0 : index
      %69 = vector.load %arg8[%c0_38, %c0_39] : memref<8x1xf32, #tpu.memory_space<vmem>>, vector<8x1xf32>
      %70 = tpu.reciprocal %69 {approx = true} : vector<8x1xf32> -> vector<8x1xf32>
      %c0_40 = arith.constant 0 : index
      %c0_41 = arith.constant 0 : index
      %71 = vector.load %arg9[%c0_40, %c0_41] : memref<8x1xf32, #tpu.memory_space<vmem>>, vector<8x1xf32>
      %72 = arith.mulf %71, %70 : vector<8x1xf32>
      %73 = arith.subf %68, %72 : vector<8x1xf32>
      %c3_i32_42 = arith.constant 3 : i32
      %74 = arith.muli %arg0, %c3_i32_42 : i32
      %75 = arith.addi %74, %arg1 : i32
      %c8_i32_43 = arith.constant 8 : i32
      %76 = arith.muli %75, %c8_i32_43 : i32
      %77 = tpu.iota {dimensions = array<i32: 0>} : vector<8x1xi32>
      %78 = vector.broadcast %76 : i32 to vector<8x1xi32>
      %79 = arith.addi %78, %77 : vector<8x1xi32>
      %c20_i32_44 = arith.constant 20 : i32
      %80 = vector.broadcast %c20_i32_44 : i32 to vector<8x1xi32>
      %81 = arith.cmpi slt, %79, %80 : vector<8x1xi32>
      %cst_45 = arith.constant 0.000000e+00 : f32
      %82 = vector.broadcast %cst_45 : f32 to vector<8x1xf32>
      %83 = arith.select %81, %73, %82 : vector<8x1xi1>, vector<8x1xf32>
      %c0_46 = arith.constant 0 : index
      %c0_47 = arith.constant 0 : index
      %84 = vector.load %arg10[%c0_46, %c0_47] : memref<8x1xf32, #tpu.memory_space<vmem>>, vector<8x1xf32>
      %85 = arith.addf %84, %83 : vector<8x1xf32>
      %c0_48 = arith.constant 0 : index
      %c0_49 = arith.constant 0 : index
      %86 = vector.load %arg10[%c0_48, %c0_49] : memref<8x1xf32, #tpu.memory_space<vmem>>, vector<8x1xf32>
      tpu.vector_store %arg10[%c0_48, %c0_49], %85 {strides = array<i32>} : memref<8x1xf32, #tpu.memory_space<vmem>>, vector<8x1xf32>,
    } else {
    }
    %c2_i32 = arith.constant 2 : i32
    %60 = arith.cmpi eq, %arg1, %c2_i32 : i32
    %c0_i32_32 = arith.constant 0 : i32
    %61 = arith.cmpi eq, %arg2, %c0_i32_32 : i32
    %62 = arith.andi %60, %61 : i1
    %63 = arith.extui %62 : i1 to i32
    %c0_i32_33 = arith.constant 0 : i32
    %64 = arith.cmpi ne, %63, %c0_i32_33 : i32
    scf.if %64 {
      %c0_34 = arith.constant 0 : index
      %c0_35 = arith.constant 0 : index
      %65 = vector.load %arg10[%c0_34, %c0_35] : memref<8x1xf32, #tpu.memory_space<vmem>>, vector<8x1xf32>
      %66 = vector.shape_cast %65 : vector<8x1xf32> to vector<1x8x1xf32>
      %cst_36 = arith.constant dense<0.000000e+00> : vector<1xf32>
      %67 = vector.multi_reduction <add>, %66, %cst_36 [1, 2] : vector<1x8x1xf32> to vector<1xf32>
      %68 = vector.shape_cast %67 : vector<1xf32> to vector<1x1x1xf32>
      %69 = vector.extract %68[0, 0, 0] : f32 from vector<1x1x1xf32>
      %cst_37 = arith.constant 0.000000e+00 : f32
      %70 = vector.broadcast %cst_37 : f32 to vector<1x8x128xf32>
      %71 = vector.broadcast %69 : f32 to vector<1x8x128xf32>
      %72 = arith.addf %70, %71 : vector<1x8x128xf32>
      %c0_38 = arith.constant 0 : index
      %c0_39 = arith.constant 0 : index
      %c0_40 = arith.constant 0 : index
      %73 = vector.load %arg5[%c0_38, %c0_39, %c0_40] : memref<1x8x128xf32, #tpu.memory_space<vmem>>, vector<1x8x128xf32>
      tpu.vector_store %arg5[%c0_38, %c0_39, %c0_40], %72 {strides = array<i32>} : memref<1x8x128xf32, #tpu.memory_space<vmem>>, vector<1x8x128xf32>,
    } else {
    }
    return
  }
  func.func @transform_0(%arg0: i32, %arg1: i32, %arg2: i32) -> (i32, i32) {
    %c3_i32 = arith.constant 3 : i32
    %0 = arith.muli %arg0, %c3_i32 : i32
    %1 = arith.addi %0, %arg1 : i32
    %c2_i32 = arith.constant 2 : i32
    %2 = arith.minsi %1, %c2_i32 : i32
    %c0_i32 = arith.constant 0 : i32
    return %2, %arg2 : i32, i32
  }
  func.func @transform_1(%arg0: i32, %arg1: i32, %arg2: i32) -> (i32, i32) {
    %c3_i32 = arith.constant 3 : i32
    %0 = arith.muli %arg0, %c3_i32 : i32
    %1 = arith.addi %0, %arg1 : i32
    %c2_i32 = arith.constant 2 : i32
    %2 = arith.minsi %1, %c2_i32 : i32
    %c0_i32 = arith.constant 0 : i32
    return %2, %arg2 : i32, i32
  }
  func.func @transform_2(%arg0: i32, %arg1: i32, %arg2: i32) -> (i32, i32, i32) {
    %c0_i32 = arith.constant 0 : i32
    %c0_i32_0 = arith.constant 0 : i32
    %c0_i32_1 = arith.constant 0 : i32
    return %arg0, %c0_i32, %c0_i32_0 : i32, i32, i32
  }
}

</mosaic_0001>

<llo_original>
// kernel: tpu_custom_call.1
$region0: #{tpu_custom_call.1}
  #allocation0 [shape = 'u32[]', space=smem, size = 0x4, offset = 0x4, fixed_abs, tag = 'smem constant byte address 0x4 - core index']
  #allocation1 [shape = 'u32[144,128]{1,0:T(1,128)}', space=vmem, size = 0x12000, scoped, tag = 'internal scratch']
  #allocation2 [shape = 'f32[8,1]{1,0:T(8,128)}', space=vmem, size = 0x1000, scoped, tag = 'scratch operand']
  #allocation3 [shape = 'f32[8,1]{1,0:T(8,128)}', space=vmem, size = 0x1000, scoped, tag = 'scratch operand']
  #allocation4 [shape = 'f32[8,1]{1,0:T(8,128)}', space=vmem, size = 0x1000, scoped, tag = 'scratch operand']
  #allocation5 [shape = 'f32[8,1]{1,0:T(8,128)}', space=vmem, size = 0x1000, scoped, tag = 'scratch operand']
  #allocation6 [shape = 'f32[8,1]{1,0:T(8,128)}', space=vmem, size = 0x1000, scoped, tag = 'scratch operand']
  %s0 = inlined_call_operand.vmem [shape: f32[20,16], index: 0, kind: input, shape index: {}]
  %s1 = inlined_call_operand.vmem [shape: f32[20,16], index: 1, kind: input, shape index: {}]
  %s2 = inlined_call_operand.hbm [shape: f32[1,8,128], index: 2, kind: output, shape index: {}]
  %s3 = sld [smem:[#allocation0]]
  $region57: #{tpu_custom_call.1} parent=0
    _
  %s5 = ssub.s32 1, %s3
  %s6 = scalar_select 0, %s5, %s3
  $region1: #{tpu_custom_call.1} parent=0
    #allocation7 [shape = 'u8[4096]{0}', space=vmem, size = 0x1000, scoped, tag = 'output window, operand 0, single buffered']
    #allocation8 [shape = 's32[2]{0}', space=sflag, size = 0x8, scoped, tag = 'scoped memory for tpu_custom_call.1']
    %7 = vsyncpa [#allocation8], 0
    loop: start=0, step=1, limit=5
    $region2: #{tpu_custom_call.1} parent=1 // loop_pre_header
      _
    $region3: #{tpu_custom_call.1} parent=1 // loop_header
      %s9 = sphi 0, %s13
      %p10 = scmp.ge.s32.totalorder %s9, 5
      %s16 = sphi 0, %s35
      %s17 = sphi 0, %s31
      %s18 = sphi 0, %s27
      %s19 = sphi 0, %s16
      %s20 = sphi 0, %s17
      %s21 = sphi 0, %s18
      %s22 = sphi 0, %s19
      %s23 = sphi 0, %s20
      %s24 = sphi 0, %s21
      %s48 = sphi 0, %s50
      %s51 = sphi 0, %s48
      %s52 = sphi 0, %s51
      %s68 = sphi 0, %s52
      %s84 = sphi 0, %s86
      %s87 = sphi 0, %s84
      %s88 = sphi 0, %s87
      %s104 = sphi 0, %s88
      %s110 = sphi 0, %s112
      %s113 = sphi 0, %s110
      %s114 = sphi 0, %s113
      %s130 = sphi 0, %s114
    $region4: #{tpu_custom_call.1} parent=1 // loop_header_branch
      %12 = sbr.rel (%p10) target = $region8
    $region5: #{tpu_custom_call.1} parent=1 // loop_body
      %s14 = ssub.s32 %s9, 1
      %s15 = ssub.s32 %s9, 2
      %s25 = sadd.s32 1, %s18
      %p26 = scmp.ge.s32.totalorder %s25, 1
      %s27 = scalar_select %p26, 0, %s25
      %s28 = sadd.s32 1, %s17
      %s29 = scalar_select %p26, %s28, %s17
      %p30 = scmp.ge.s32.totalorder %s29, 3
      %s31 = scalar_select %p30, 0, %s29
      %s32 = sadd.s32 1, %s16
      %s33 = scalar_select %p30, %s32, %s16
      %p34 = scmp.ge.s32.totalorder %s33, 1
      %s35 = scalar_select %p34, 0, %s33
      %s36 = smul.u32 %s16, 3
      %s37 = sadd.s32 %s36, %s17
      %p38 = scmp.lt.s32.totalorder %s37, 2
      %s39 = scalar_select %p38, %s37, 2
      %s40 = smul.u32 %s35, 3
      %s41 = sadd.s32 %s40, %s31
      %p42 = scmp.lt.s32.totalorder %s41, 2
      %s43 = scalar_select %p42, %s41, 2
      %s44 = ssub.s32 %s39, %s43
      %s45 = ssub.s32 %s18, %s27
      %s46 = sor.u32 %s44, %s45
      %p47 = scmp.eq.s32.totalorder %s46, 0
      %s49 = sadd.s32 %s48, 1
      %s50 = scalar_select %p47, %s48, %s49
      %p53 = pneg %p47
      %p54 = scmp.eq.s32.totalorder %s9, 2
      %p55 = por %p53, %p54
      %p56 = scmp.ne.s32.totalorder %s48, %s51
      %p57 = scmp.eq.s32.totalorder %s9, 0
      %p58 = por %p56, %p57
      %p59 = scmp.ne.s32.totalorder %s48, %s51
      %p60 = scmp.eq.s32.totalorder %s14, 2
      %p61 = por %p59, %p60
      %p62 = scmp.ne.s32.totalorder %s51, %s52
      %p63 = scmp.eq.s32.totalorder %s14, 0
      %p64 = por %p62, %p63
      %p65 = scmp.ne.s32.totalorder %s51, %s52
      %p66 = scmp.eq.s32.totalorder %s15, 2
      %p67 = por %p65, %p66
      %p69 = scmp.ne.s32.totalorder %s52, %s68
      %p70 = scmp.eq.s32.totalorder %s15, 0
      %p71 = por %p69, %p70
      %s72 = smul.u32 %s16, 3
      %s73 = sadd.s32 %s72, %s17
      %p74 = scmp.lt.s32.totalorder %s73, 2
      %s75 = scalar_select %p74, %s73, 2
      %s76 = smul.u32 %s35, 3
      %s77 = sadd.s32 %s76, %s31
      %p78 = scmp.lt.s32.totalorder %s77, 2
      %s79 = scalar_select %p78, %s77, 2
      %s80 = ssub.s32 %s75, %s79
      %s81 = ssub.s32 %s18, %s27
      %s82 = sor.u32 %s80, %s81
      %p83 = scmp.eq.s32.totalorder %s82, 0
      %s85 = sadd.s32 %s84, 1
      %s86 = scalar_select %p83, %s84, %s85
      %p89 = pneg %p83
      %p90 = scmp.eq.s32.totalorder %s9, 2
      %p91 = por %p89, %p90
      %p92 = scmp.ne.s32.totalorder %s84, %s87
      %p93 = scmp.eq.s32.totalorder %s9, 0
      %p94 = por %p92, %p93
      %p95 = scmp.ne.s32.totalorder %s84, %s87
      %p96 = scmp.eq.s32.totalorder %s14, 2
      %p97 = por %p95, %p96
      %p98 = scmp.ne.s32.totalorder %s87, %s88
      %p99 = scmp.eq.s32.totalorder %s14, 0
      %p100 = por %p98, %p99
      %p101 = scmp.ne.s32.totalorder %s87, %s88
      %p102 = scmp.eq.s32.totalorder %s15, 2
      %p103 = por %p101, %p102
      %p105 = scmp.ne.s32.totalorder %s88, %s104
      %p106 = scmp.eq.s32.totalorder %s15, 0
      %p107 = por %p105, %p106
      %s108 = ssub.s32 %s16, %s35
      %p109 = scmp.eq.s32.totalorder %s108, 0
      %s111 = sadd.s32 %s110, 1
      %s112 = scalar_select %p109, %s110, %s111
      %p115 = pneg %p109
      %p116 = scmp.eq.s32.totalorder %s9, 2
      %p117 = por %p115, %p116
      %p118 = scmp.ne.s32.totalorder %s110, %s113
      %p119 = scmp.eq.s32.totalorder %s9, 0
      %p120 = por %p118, %p119
      %p121 = scmp.ne.s32.totalorder %s110, %s113
      %p122 = scmp.eq.s32.totalorder %s14, 2
      %p123 = por %p121, %p122
      %p124 = scmp.ne.s32.totalorder %s113, %s114
      %p125 = scmp.eq.s32.totalorder %s14, 0
      %p126 = por %p124, %p125
      %p127 = scmp.ne.s32.totalorder %s113, %s114
      %p128 = scmp.eq.s32.totalorder %s15, 2
      %p129 = por %p127, %p128
      %p131 = scmp.ne.s32.totalorder %s114, %s130
      %p132 = scmp.eq.s32.totalorder %s15, 0
      %p133 = por %p131, %p132
      %p134 = scmp.le.s32.totalorder 1, %s9
      %p135 = scmp.lt.s32.totalorder %s9, 4
      %p136 = pnand %p134, %p135
      %p137 = pneg %p136
      // Predicated region
      $region9: #{tpu_custom_call.1} parent=5 // pred_check
        _
      $region10: #{tpu_custom_call.1} parent=5 // pred_check_branch
        %139 = sbr.rel (%p136) target = $region12
      $region11: #{tpu_custom_call.1} parent=5 // pred_region
        %s140 = ssub.s32 %s9, 1
      $region12: #{tpu_custom_call.1} parent=5 // pred_fallthru
        _
      %p141 = scmp.lt.s32.totalorder %s9, 3
      // Predicated region
      $region13: #{tpu_custom_call.1} parent=5 // pred_check
        %p142 = pneg %p141
      $region14: #{tpu_custom_call.1} parent=5 // pred_check_branch
        %144 = sbr.rel (%p142) target = $region16
      $region15: #{tpu_custom_call.1} parent=5 // pred_region
        // Predicated region
        $region17: #{tpu_custom_call.1} parent=15 // pred_check
          %p145 = pneg %p58
        $region18: #{tpu_custom_call.1} parent=15 // pred_check_branch
          %147 = sbr.rel (%p145) target = $region20
        $region19: #{tpu_custom_call.1} parent=15 // pred_region
          %s148 = smul.u32 %s16, 3
          %s149 = sadd.s32 %s148, %s17
          %p150 = scmp.lt.s32.totalorder %s149, 2
          %s151 = scalar_select %p150, %s149, 2
          %p152 = scmp.lt.s32.totalorder %s151, 2
          %s153 = scalar_select %p152, %s151, 2
          %p154 = scmp.lt.s32.totalorder %s18, 0
          %s155 = scalar_select %p154, %s18, 0
          %s156 = sadd.s32 %s155, %s153
          %s157 = smul.addr %s156, 8
          %s158 = scalar_lea.vmem %s0, %s157
          %s159 = smul.u32 %s16, 3
          %s160 = sadd.s32 %s159, %s17
          %p161 = scmp.lt.s32.totalorder %s160, 2
          %s162 = scalar_select %p161, %s160, 2
        $region20: #{tpu_custom_call.1} parent=15 // pred_fallthru
          _
        // Predicated region
        $region21: #{tpu_custom_call.1} parent=15 // pred_check
          %p163 = pneg %p94
        $region22: #{tpu_custom_call.1} parent=15 // pred_check_branch
          %165 = sbr.rel (%p163) target = $region24
        $region23: #{tpu_custom_call.1} parent=15 // pred_region
          %s166 = smul.u32 %s16, 3
          %s167 = sadd.s32 %s166, %s17
          %p168 = scmp.lt.s32.totalorder %s167, 2
          %s169 = scalar_select %p168, %s167, 2
          %p170 = scmp.lt.s32.totalorder %s169, 2
          %s171 = scalar_select %p170, %s169, 2
          %p172 = scmp.lt.s32.totalorder %s18, 0
          %s173 = scalar_select %p172, %s18, 0
          %s174 = sadd.s32 %s173, %s171
          %s175 = smul.addr %s174, 8
          %s176 = scalar_lea.vmem %s1, %s175
          %s177 = smul.u32 %s16, 3
          %s178 = sadd.s32 %s177, %s17
          %p179 = scmp.lt.s32.totalorder %s178, 2
          %s180 = scalar_select %p179, %s178, 2
        $region24: #{tpu_custom_call.1} parent=15 // pred_fallthru
          _
      $region16: #{tpu_custom_call.1} parent=5 // pred_fallthru
        _
      %p181 = scmp.le.s32.totalorder 1, %s9
      %p182 = scmp.lt.s32.totalorder %s9, 4
      %p183 = pnand %p181, %p182
      %p184 = pneg %p183
      // Predicated region
      $region25: #{tpu_custom_call.1} parent=5 // pred_check
        _
      $region26: #{tpu_custom_call.1} parent=5 // pred_check_branch
        %186 = sbr.rel (%p183) target = $region28
      $region27: #{tpu_custom_call.1} parent=5 // pred_region
        %s187 = ssub.s32 %s9, 1
        %s188 = smul.u32 %s19, 3
        %s189 = sadd.s32 %s188, %s20
        %p190 = scmp.lt.s32.totalorder %s189, 2
        %s191 = scalar_select %p190, %s189, 2
        %p192 = scmp.lt.s32.totalorder %s191, 2
        %s193 = scalar_select %p192, %s191, 2
        %p194 = scmp.lt.s32.totalorder %s21, 0
        %s195 = scalar_select %p194, %s21, 0
        %s196 = sadd.s32 %s195, %s193
        %s197 = smul.addr %s196, 8
        %s198 = scalar_lea.vmem %s0, %s197
        %p199 = pneg %p64
        %p200 = pneg %p61
        %s201 = smul.u32 %s19, 3
        %s202 = sadd.s32 %s201, %s20
        %p203 = scmp.lt.s32.totalorder %s202, 2
        %s204 = scalar_select %p203, %s202, 2
        %p205 = scmp.lt.s32.totalorder %s204, 2
        %s206 = scalar_select %p205, %s204, 2
        %p207 = scmp.lt.s32.totalorder %s21, 0
        %s208 = scalar_select %p207, %s21, 0
        %s209 = sadd.s32 %s208, %s206
        %s210 = smul.addr %s209, 8
        %s211 = scalar_lea.vmem %s1, %s210
        %p212 = pneg %p100
        %p213 = pneg %p97
        %p214 = pneg %p126
        %p215 = pneg %p123
        %s216 = smul.u32 %s19, 3
        %s217 = sadd.s32 %s216, %s20
        %p218 = scmp.lt.s32.totalorder %s217, 2
        %s219 = scalar_select %p218, %s217, 2
        %p220 = scmp.lt.s32.totalorder %s219, 2
        %s221 = scalar_select %p220, %s219, 2
        %p222 = scmp.lt.s32.totalorder %s21, 0
        %s223 = scalar_select %p222, %s21, 0
        %s224 = sadd.s32 %s223, %s221
        %s225 = smul.addr %s224, 8
        %s226 = scalar_lea.vmem %s0, %s225
        %s227 = smul.u32 %s19, 3
        %s228 = sadd.s32 %s227, %s20
        %p229 = scmp.lt.s32.totalorder %s228, 2
        %s230 = scalar_select %p229, %s228, 2
        %s231 = smul.u32 %s19, 3
        %s232 = sadd.s32 %s231, %s20
        %p233 = scmp.lt.s32.totalorder %s232, 2
        %s234 = scalar_select %p233, %s232, 2
        %p235 = scmp.lt.s32.totalorder %s234, 2
        %s236 = scalar_select %p235, %s234, 2
        %p237 = scmp.lt.s32.totalorder %s21, 0
        %s238 = scalar_select %p237, %s21, 0
        %s239 = sadd.s32 %s238, %s236
        %s240 = smul.addr %s239, 8
        %s241 = scalar_lea.vmem %s1, %s240
        %s242 = smul.u32 %s19, 3
        %s243 = sadd.s32 %s242, %s20
        %p244 = scmp.lt.s32.totalorder %s243, 2
        %s245 = scalar_select %p244, %s243, 2
        %p246 = scmp.eq.s32.totalorder %s20, 0
        %p247 = scmp.eq.s32.totalorder %s21, 0
        %p248 = pnand %p246, %p247
        %p249 = pneg %p248
        // Predicated region
        $region29: #{tpu_custom_call.1} parent=27 // pred_check
          _
        $region30: #{tpu_custom_call.1} parent=27 // pred_check_branch
          %251 = sbr.rel (%p248) target = $region32
        $region31: #{tpu_custom_call.1} parent=27 // pred_region
          %vm252 = vcmask 7168
          %253 = vst.msk [vmem:[#allocation6] sm:$0xff] %vm252, 0.0
        $region32: #{tpu_custom_call.1} parent=27 // pred_fallthru
          _
        // Predicated region
        $region33: #{tpu_custom_call.1} parent=27 // pred_check
          %p254 = pneg %p247
        $region34: #{tpu_custom_call.1} parent=27 // pred_check_branch
          %256 = sbr.rel (%p254) target = $region36
        $region35: #{tpu_custom_call.1} parent=27 // pred_region
          %vm257 = vcmask 7168
          %258 = vst.msk [vmem:[#allocation2] sm:$0xff] %vm257, -inf
          %259 = vst.msk [vmem:[#allocation3] sm:$0xff] %vm257, 0.0
          %260 = vst.msk [vmem:[#allocation4] sm:$0xff] %vm257, 0.0
          %261 = vst.msk [vmem:[#allocation5] sm:$0xff] %vm257, 0.0
        $region36: #{tpu_custom_call.1} parent=27 // pred_fallthru
          _
        %v262 = vld [vmem:[%s226] sm:$0xff]
        %v263 = vld [vmem:[%s241] sm:$0xff]
        %s264 = smul.u32 %s19, 3
        %s265 = sadd.s32 %s264, %s20
        %s266 = smul.u32 %s265, 8
        %v267 = vlaneseq
        %v268 = vshrl.u32 %v267, 7
        %v269 = vstv %s266
        %v270 = vadd.s32 %v269, %v268
        %vm271 = vcmp.lt.s32.totalorder %v270, 20
        %v272 = vsel %vm271, 1, 0
        %vm273 = vcmp.eq.s32.totalorder %v272, 1
        %v274 = vsel %vm273, %v262, 0.0
        %v275 = vsel %vm273, %v263, 1.0
        %vm276 = vcmask 130048
        %v277 = vsel %vm276, %v274, -inf
        %278 = vmax.xlane.f32.xlu0 %v277
        %v279 = vpop.xlane.xlu0 %278
        %v280 = vld [vmem:[#allocation2] sm:$0xff]
        %v281 = vmax.f32 %v280, %v279
        %v282 = vsub.f32 %v280, %v281
        %v283 = vmul.f32 %v282, 1.442695
        %v284 = vpow.pop %v283
        %286 = vset.pattern.permute.xlu0 0
        %287 = vperm.xlu0 %286, %v281
        %v288 = vpop.permute.xlu0 %287
        %v290 = vsub.f32 %v274, %v288
        %v291 = vmul.f32 %v290, 1.442695
        %v292 = vpow.pop %v291
        %v293 = vmul.f32 %v292, %v275
        %v294 = vld [vmem:[#allocation3] sm:$0xff]
        %v295 = vmul.f32 %v284, %v294
        %v296 = vsel %vm276, %v292, 0.0
        %297 = vadd.xlane.f32.xlu0 %v296
        %v298 = vpop.xlane.xlu0 %297
        %v299 = vadd.f32 %v295, %v298
        %vm300 = vcmask 7168
        %301 = vst.msk [vmem:[#allocation3] sm:$0xff] %vm300, %v299
        %v302 = vld [vmem:[#allocation4] sm:$0xff]
        %v303 = vmul.f32 %v284, %v302
        %v304 = vsel %vm276, %v293, 0.0
        %305 = vadd.xlane.f32.xlu0 %v304
        %v306 = vpop.xlane.xlu0 %305
        %v307 = vadd.f32 %v303, %v306
        %308 = vst.msk [vmem:[#allocation4] sm:$0xff] %vm300, %v307
        %v309 = vld [vmem:[#allocation5] sm:$0xff]
        %v310 = vmul.f32 %v284, %v309
        %v311 = vmul.f32 %v293, %v274
        %v312 = vsel %vm276, %v311, 0.0
        %313 = vadd.xlane.f32.xlu0 %v312
        %v314 = vpop.xlane.xlu0 %313
        %v315 = vadd.f32 %v310, %v314
        %316 = vst.msk [vmem:[#allocation5] sm:$0xff] %vm300, %v315
        %317 = vst.msk [vmem:[#allocation2] sm:$0xff] %vm300, %v281
        // Predicated region
        $region37: #{tpu_custom_call.1} parent=27 // pred_check
          %p318 = pneg %p247
        $region38: #{tpu_custom_call.1} parent=27 // pred_check_branch
          %320 = sbr.rel (%p318) target = $region40
        $region39: #{tpu_custom_call.1} parent=27 // pred_region
          %v321 = vld [vmem:[#allocation2] sm:$0xff]
          %v322 = vld [vmem:[#allocation3] sm:$0xff]
          %v323 = vlog2.pop %v322
          %v324 = vmul.f32 %v323, 0.6931472
          %v325 = vadd.f32 %v321, %v324
          %v326 = vld [vmem:[#allocation4] sm:$0xff]
          %v327 = vrcp.pop %v326
          %v328 = vld [vmem:[#allocation5] sm:$0xff]
          %v329 = vmul.f32 %v328, %v327
          %v330 = vsub.f32 %v325, %v329
          %v331 = vsel %vm271, %v330, 0.0
          %v332 = vld [vmem:[#allocation6] sm:$0xff]
          %v333 = vadd.f32 %v332, %v331
          %334 = vst.msk [vmem:[#allocation6] sm:$0xff] %vm300, %v333
        $region40: #{tpu_custom_call.1} parent=27 // pred_fallthru
          _
        %p335 = scmp.eq.s32.totalorder %s20, 2
        %p336 = pnand %p335, %p247
        %p337 = pneg %p336
        // Predicated region
        $region41: #{tpu_custom_call.1} parent=27 // pred_check
          _
        $region42: #{tpu_custom_call.1} parent=27 // pred_check_branch
          %339 = sbr.rel (%p336) target = $region44
        $region43: #{tpu_custom_call.1} parent=27 // pred_region
          %v340 = vld [vmem:[#allocation6] sm:$0xff]
          %v341 = vsel %vm300, %v340, 0.0
          %342 = vadd.xlane.f32.xlu0 %v341
          %v343 = vpop.xlane.xlu0 %342
          %v344 = vrot.slane %v343, 4
          %v345 = vadd.f32 %v343, %v344
          %v346 = vrot.slane %v345, 2
          %v347 = vadd.f32 %v345, %v346
          %v348 = vrot.slane %v347, 1
          %v349 = vadd.f32 %v347, %v348
          %s350 = vtos %v349
          %v351 = vstv %s350
          %v352 = vadd.f32 %v351, 0.0
          %353 = vst [vmem:[#allocation7] sm:$0xff] %v352
        $region44: #{tpu_custom_call.1} parent=27 // pred_fallthru
          _
        // Predicated region
        $region45: #{tpu_custom_call.1} parent=27 // pred_check
          %p354 = pneg %p123
        $region46: #{tpu_custom_call.1} parent=27 // pred_check_branch
          %356 = sbr.rel (%p354) target = $region48
        $region47: #{tpu_custom_call.1} parent=27 // pred_region
          %s358 = ssub.s32 128, 128
          %359 = vsyncadd [#allocation8], %s358
          %s360 = smul.addr %s19, 128
          %s361 = scalar_lea.hbm %s2, %s360
          %s363 = sshll.u32 [#allocation7], 4
          %s364 = int_to_ptr.vmem [resolvable:$true] %s363
          %366 = dma.vmem_to_hbm [thread:$0]  %s364, 128, %s361, [#allocation8]
        $region48: #{tpu_custom_call.1} parent=27 // pred_fallthru
          _
        // Predicated region
        $region49: #{tpu_custom_call.1} parent=27 // pred_check
          %p367 = pneg %p123
        $region50: #{tpu_custom_call.1} parent=27 // pred_check_branch
          %369 = sbr.rel (%p367) target = $region52
        $region51: #{tpu_custom_call.1} parent=27 // pred_region
          %370 = dma.done [#allocation8], 128
        $region52: #{tpu_custom_call.1} parent=27 // pred_fallthru
          _
      $region28: #{tpu_custom_call.1} parent=5 // pred_fallthru
        _
      %p371 = scmp.le.s32.totalorder 2, %s9
      // Predicated region
      $region53: #{tpu_custom_call.1} parent=5 // pred_check
        %p372 = pneg %p371
      $region54: #{tpu_custom_call.1} parent=5 // pred_check_branch
        %374 = sbr.rel (%p372) target = $region56
      $region55: #{tpu_custom_call.1} parent=5 // pred_region
        %s375 = ssub.s32 %s9, 2
      $region56: #{tpu_custom_call.1} parent=5 // pred_fallthru
        _
    $region6: #{tpu_custom_call.1} parent=1 // loop_footer
      %s13 = sadd.s32 1, %s9
    $region7: #{tpu_custom_call.1} parent=1 // loop_footer_branch
      %8 = sbr.rel target = $region3
    $region8: #{tpu_custom_call.1} parent=1 // loop_exit
      _
    %376 = vsyncpa [#allocation8], 1
    %s377 = scalar_lea.sflag [#allocation8], 1
    %378 = vsyncpa %s377, 1

</llo_original>
